<compile_context>
chip_gen: v7x
topology: tpu7x:2x2x1
jax: 0.10.0
libtpu: 0.0.40
codegen_flags: <defaults>
</compile_context>

<pallas_src>
import functools

import jax
import jax.numpy as jnp
from jax.experimental import pallas as pl
from jax.experimental.pallas import tpu as pltpu


NUM_CORE_SPLITS = 2  # keeps v7x's 2nd TensorCore busy; harmless serial loop on v5e/v6e


def _round_up(a: int, b: int) -> int:
    return ((a + b - 1) // b) * b


def _cdiv(a: int, b: int) -> int:
    return (a + b - 1) // b


def _ins_disc_kernel(x_ref, w1_ref, w2_ref, out_ref, acc_ref, *,
                     target_is_one, tile_n, tiles_per_core, n_valid):
    """One N-tile of: Linear(F,F) -> ReLU -> Linear(F,1) -> sigmoid focal loss (partial sum).

    x_ref  : (TILE_N, F) bf16 input tile (zero-padded past n_valid global rows)
    w1_ref : (F, F)      bf16 first Linear weight, PyTorch (out, in) layout, resident
    w2_ref : (1, F)      bf16 second Linear weight, PyTorch (out, in) layout, resident
    out_ref: (8, TILE_N) f32 per-core-split partial-loss slab (row 0 carries the data)
    acc_ref: (1, TILE_N) f32 lane-wise loss accumulator across the reduction axis
    """
    c = pl.program_id(0)          # core-split axis ("parallel")
    i = pl.program_id(1)          # N-tile within the split ("arbitrary" reduction)

    @pl.when(i == 0)
    def _init():
        acc_ref[...] = jnp.zeros_like(acc_ref)

    # Linear(F, F, bias=False): x @ w1.T -- NT contraction straight off the (out, in) layout.
    h = jax.lax.dot_general(x_ref[...], w1_ref[...], (((1,), (1,)), ((), ())),
                            preferred_element_type=jnp.float32)        # (TILE_N, F) f32
    h = jnp.maximum(h, 0.0)                                            # ReLU

    # Linear(F, 1, bias=False), lane-dense: (1, F) . (TILE_N, F)^T -> (1, TILE_N).
    z = jax.lax.dot_general(w2_ref[...], h.astype(jnp.bfloat16),
                            (((1,), (1,)), ((), ())),
                            preferred_element_type=jnp.float32)        # (1, TILE_N) f32

    # sigmoid_focal_loss(alpha=0.25, gamma=2) specialized on the static target:
    #   t == 0: loss = 0.75 * softplus( z) * sigmoid( z)**2
    #   t == 1: loss = 0.25 * softplus(-z) * sigmoid(-z)**2
    u = -z if target_is_one else z
    alpha_t = 0.25 if target_is_one else 0.75

    e = jnp.exp(-jnp.abs(u))                           # single exp, shared below (f32)
    softplus_u = jnp.maximum(u, 0.0) + jnp.log1p(e)    # stable BCE-with-logits term
    inv = pl.reciprocal(1.0 + e, approx=True)          # EUP slot
    sig_u = jnp.where(u >= 0.0, inv, e * inv)          # sigmoid(u) from the same exp
    loss = alpha_t * softplus_u * (sig_u * sig_u)      # gamma == 2 -> explicit square

    # Mask zero-padded rows past the true N, accumulate lane-wise (no per-step XLU reduce).
    lane = jax.lax.broadcasted_iota(jnp.int32, loss.shape, dimension=1)
    row0 = (c * tiles_per_core + i) * tile_n
    acc_ref[...] += jnp.where(row0 + lane < n_valid, loss, 0.0)

    # One lane-dense writeback per core-split; rows 1..7 are zero filler.
    @pl.when(i == tiles_per_core - 1)
    def _finalize():
        sub = jax.lax.broadcasted_iota(jnp.int32, (8, tile_n), 0)
        out_ref[...] = jnp.where(sub == 0, acc_ref[...], 0.0)


def ins_discriminator_forward(x, w1, w2, domain_target=False, alpha=1.0, max_tile_n=512):
    """Forward of InsDiscriminator.

    x : (N, in_feature) float32 instance-level ROI features
    w1: (in_feature, in_feature)  PyTorch Linear weight (out, in) layout -- NOT transposed
    w2: (1, in_feature)           PyTorch Linear weight (out, in) layout -- NOT transposed

    GradReverse.apply(x, alpha) is the identity in the forward pass.
    Returns {'loss_instance_d': scalar} (mean sigmoid focal loss).
    """
    del alpha  # only affects the backward pass (gradient reversal)
    N, F = x.shape
    assert w1.shape == (F, F) and w2.shape == (1, F)

    if N == 0:  # empty ROI batch: define the mean over zero instances as 0 (avoid NaN)
        return {"loss_instance_d": jnp.float32(0.0)}

    per_core = _cdiv(N, NUM_CORE_SPLITS)
    tile_n = max(16, min(max_tile_n, _round_up(per_core, 16)))  # 16: bf16 sublane packing
    tiles_per_core = _cdiv(per_core, tile_n)
    n_pad = NUM_CORE_SPLITS * tiles_per_core * tile_n
    if n_pad != N:
        x = jnp.pad(x, ((0, n_pad - N), (0, 0)))

    # bf16 for the MXU; accumulation and the focal-loss epilogue stay f32 in the kernel.
    x_b = x.astype(jnp.bfloat16)
    w1_b = w1.astype(jnp.bfloat16)
    w2_b = w2.astype(jnp.bfloat16)

    kernel = functools.partial(
        _ins_disc_kernel,
        target_is_one=bool(domain_target),
        tile_n=tile_n,
        tiles_per_core=tiles_per_core,
        n_valid=N,
    )

    # Explicit scoped-VMEM budget: single-buffered bf16 weight + double-buffered bf16 x
    # tiles + f32 h temporary + output blocks + scratch + slack.
    vmem_bytes = (
        F * F * 2                 # w1 bf16, Buffered(1)
        + 2 * F * 2               # w2 bf16
        + 2 * tile_n * F * 2      # x tiles, double-buffered bf16
        + 2 * tile_n * F * 4      # f32 h temporary headroom
        + 2 * 8 * tile_n * 4      # output blocks
        + 8 * tile_n * 4          # loss accumulator scratch (padded)
    )
    vmem_limit = int(min(100 * 1024 * 1024, vmem_bytes + (2 << 20)))

    cost = pl.CostEstimate(
        flops=int(2 * n_pad * F * F + 2 * n_pad * F + 10 * n_pad),
        transcendentals=int(3 * n_pad),
        bytes_accessed=int(2 * (n_pad * F + F * F + F)
                           + 4 * NUM_CORE_SPLITS * 8 * tile_n),
    )

    out = pl.pallas_call(
        kernel,
        out_shape=jax.ShapeDtypeStruct((NUM_CORE_SPLITS * 8, tile_n), jnp.float32),
        grid=(NUM_CORE_SPLITS, tiles_per_core),
        in_specs=[
            # pipelined x tiles
            pl.BlockSpec((tile_n, F), lambda c, i: (c * tiles_per_core + i, 0)),
            # resident weights: constant index_map => single buffer saves VMEM
            pl.BlockSpec((F, F), lambda c, i: (0, 0), pipeline_mode=pl.Buffered(1)),
            pl.BlockSpec((1, F), lambda c, i: (0, 0), pipeline_mode=pl.Buffered(1)),
        ],
        out_specs=pl.BlockSpec((8, tile_n), lambda c, i: (c, 0)),
        scratch_shapes=[pltpu.VMEM((1, tile_n), jnp.float32)],
        compiler_params=pltpu.CompilerParams(
            dimension_semantics=("parallel", "arbitrary"),
            vmem_limit_bytes=vmem_limit,
        ),
        cost_estimate=cost,
    )(x_b, w1_b, w2_b)

    # Only row 0 of each core-split slab is non-zero; sum + mean are tiny and run in XLA.
    return {"loss_instance_d": jnp.sum(out) / N}


def _reference_forward(x, w1, w2, domain_target=False):
    # Pure-JAX f32 reference mirroring the PyTorch module (fvcore sigmoid_focal_loss).
    h = jnp.maximum(x @ w1.T, 0.0)
    logits = h @ w2.T
    t = jnp.ones_like(logits) if domain_target else jnp.zeros_like(logits)
    p = jax.nn.sigmoid(logits)
    ce = jnp.maximum(logits, 0.0) - logits * t + jnp.log1p(jnp.exp(-jnp.abs(logits)))
    p_t = p * t + (1 - p) * (1 - t)
    loss = ce * (1 - p_t) ** 2
    alpha_t = 0.25 * t + 0.75 * (1 - t)
    return jnp.mean(alpha_t * loss)


if __name__ == "__main__":
    key = jax.random.PRNGKey(0)
    k_x, k_w1, k_w2, k_x2 = jax.random.split(key, 4)

    in_feature = 128
    # nn.init.normal_(weight, mean=0.0, std=0.01) for both Linear layers.
    w1 = 0.01 * jax.random.normal(k_w1, (in_feature, in_feature), dtype=jnp.float32)
    w2 = 0.01 * jax.random.normal(k_w2, (1, in_feature), dtype=jnp.float32)

    # Case 1: N=37 exercises padding + both core-splits with a mix of valid/padded rows.
    x1 = jax.random.normal(k_x, (37, in_feature), dtype=jnp.float32)
    # Case 2: N=100 with a small tile cap exercises the multi-tile accumulation path.
    x2 = jax.random.normal(k_x2, (100, in_feature), dtype=jnp.float32)

    cases = [(x1, False, 512), (x1, True, 512), (x2, False, 32), (x2, True, 32)]
    for xi, tgt, cap in cases:
        got = ins_discriminator_forward(xi, w1, w2, domain_target=tgt, max_tile_n=cap)
        val = jax.block_until_ready(got["loss_instance_d"])
        ref = _reference_forward(xi, w1, w2, domain_target=tgt)
        # bf16 MXU inputs + approx reciprocal -> relaxed tolerance vs the f32 reference.
        assert jnp.allclose(val, ref, rtol=2e-2, atol=1e-3), (tgt, cap, val, ref)

    print("KERNEL_OK")
</pallas_src>

<mosaic_0001>
module attributes {stable_mosaic.version = 11 : i64} {
  func.func @_ins_disc_kernel(%arg0: i32, %arg1: i32, %arg2: memref<32x128xbf16, #tpu.memory_space<vmem>>, %arg3: memref<128x128xbf16, #tpu.memory_space<vmem>>, %arg4: memref<1x128xbf16, #tpu.memory_space<vmem>>, %arg5: memref<8x32xf32, #tpu.memory_space<vmem>>, %arg6: memref<1x32xf32, #tpu.memory_space<vmem>>) attributes {dimension_semantics = [#tpu.dimension_semantics<parallel>, #tpu.dimension_semantics<arbitrary>], iteration_bounds = array<i64: 2, 1>, scalar_prefetch = 0 : i64, scratch_operands = 1 : i64, tpu.core_type = #tpu.core_type<tc>, window_params = [{transform_indices = @transform_0, window_bounds = array<i64: 32, 128>}, {pipeline_mode = #tpu.pipeline_mode<synchronous>, transform_indices = @transform_1, window_bounds = array<i64: 128, 128>}, {pipeline_mode = #tpu.pipeline_mode<synchronous>, transform_indices = @transform_2, window_bounds = array<i64: 1, 128>}, {transform_indices = @transform_3, window_bounds = array<i64: 8, 32>}]} {
    %c0_i32 = arith.constant 0 : i32
    %0 = arith.cmpi eq, %arg1, %c0_i32 : i32
    %1 = arith.extui %0 : i1 to i32
    %c0_i32_0 = arith.constant 0 : i32
    %2 = arith.cmpi ne, %1, %c0_i32_0 : i32
    scf.if %2 {
      %cst_20 = arith.constant 0.000000e+00 : f32
      %46 = vector.broadcast %cst_20 : f32 to vector<1x32xf32>
      %c0_21 = arith.constant 0 : index
      %c0_22 = arith.constant 0 : index
      %47 = vector.load %arg6[%c0_21, %c0_22] : memref<1x32xf32, #tpu.memory_space<vmem>>, vector<1x32xf32>
      tpu.vector_store %arg6[%c0_21, %c0_22], %46 {strides = array<i32>} : memref<1x32xf32, #tpu.memory_space<vmem>>, vector<1x32xf32>,
    } else {
    }
    %c0 = arith.constant 0 : index
    %c0_1 = arith.constant 0 : index
    %3 = vector.load %arg2[%c0, %c0_1] : memref<32x128xbf16, #tpu.memory_space<vmem>>, vector<32x128xbf16>
    %c0_2 = arith.constant 0 : index
    %c0_3 = arith.constant 0 : index
    %4 = vector.load %arg3[%c0_2, %c0_3] : memref<128x128xbf16, #tpu.memory_space<vmem>>, vector<128x128xbf16>
    %cst = arith.constant dense<0.000000e+00> : vector<32x128xf32>
    %5 = tpu.matmul %3, %4, %cst {dimension_numbers = #tpu.dot_dimension_numbers<[1], [1], [0], [0], [0, 0, 1, 0], [], []>} : vector<32x128xbf16>, vector<128x128xbf16>, vector<32x128xf32> -> vector<32x128xf32>
    %cst_4 = arith.constant 0.000000e+00 : f32
    %6 = vector.broadcast %cst_4 : f32 to vector<32x128xf32>
    %7 = arith.maximumf %5, %6 : vector<32x128xf32>
    %c0_5 = arith.constant 0 : index
    %c0_6 = arith.constant 0 : index
    %8 = vector.load %arg4[%c0_5, %c0_6] : memref<1x128xbf16, #tpu.memory_space<vmem>>, vector<1x128xbf16>
    %9 = arith.truncf %7 : vector<32x128xf32> to vector<32x128xbf16>
    %cst_7 = arith.constant dense<0.000000e+00> : vector<1x32xf32>
    %10 = tpu.matmul %8, %9, %cst_7 {dimension_numbers = #tpu.dot_dimension_numbers<[1], [1], [0], [0], [0, 0, 1, 0], [], []>} : vector<1x128xbf16>, vector<32x128xbf16>, vector<1x32xf32> -> vector<1x32xf32>
    %11 = math.absf %10 : vector<1x32xf32>
    %cst_8 = arith.constant 0.000000e+00 : f32
    %12 = vector.broadcast %cst_8 : f32 to vector<1x32xf32>
    %13 = arith.subf %12, %11 : vector<1x32xf32>
    %14 = math.exp %13 : vector<1x32xf32>
    %cst_9 = arith.constant 0.000000e+00 : f32
    %15 = vector.broadcast %cst_9 : f32 to vector<1x32xf32>
    %16 = arith.maximumf %10, %15 : vector<1x32xf32>
    %17 = math.log1p %14 : vector<1x32xf32>
    %18 = arith.addf %16, %17 : vector<1x32xf32>
    %cst_10 = arith.constant 1.000000e+00 : f32
    %19 = vector.broadcast %cst_10 : f32 to vector<1x32xf32>
    %20 = arith.addf %19, %14 : vector<1x32xf32>
    %21 = tpu.reciprocal %20 {approx = true} : vector<1x32xf32> -> vector<1x32xf32>
    %cst_11 = arith.constant 0.000000e+00 : f32
    %22 = vector.broadcast %cst_11 : f32 to vector<1x32xf32>
    %23 = arith.cmpf oge, %10, %22 : vector<1x32xf32>
    %24 = arith.mulf %14, %21 : vector<1x32xf32>
    %25 = arith.select %23, %21, %24 : vector<1x32xi1>, vector<1x32xf32>
    %cst_12 = arith.constant 7.500000e-01 : f32
    %26 = vector.broadcast %cst_12 : f32 to vector<1x32xf32>
    %27 = arith.mulf %26, %18 : vector<1x32xf32>
    %28 = arith.mulf %25, %25 : vector<1x32xf32>
    %29 = arith.mulf %27, %28 : vector<1x32xf32>
    %30 = tpu.iota {dimensions = array<i32: 1>} : vector<1x32xi32>
    %c1_i32 = arith.constant 1 : i32
    %31 = arith.muli %arg0, %c1_i32 : i32
    %32 = arith.addi %31, %arg1 : i32
    %c32_i32 = arith.constant 32 : i32
    %33 = arith.muli %32, %c32_i32 : i32
    %c0_13 = arith.constant 0 : index
    %c0_14 = arith.constant 0 : index
    %34 = vector.load %arg6[%c0_13, %c0_14] : memref<1x32xf32, #tpu.memory_space<vmem>>, vector<1x32xf32>
    %35 = vector.broadcast %33 : i32 to vector<1x32xi32>
    %36 = arith.addi %35, %30 : vector<1x32xi32>
    %c37_i32 = arith.constant 37 : i32
    %37 = vector.broadcast %c37_i32 : i32 to vector<1x32xi32>
    %38 = arith.cmpi slt, %36, %37 : vector<1x32xi32>
    %cst_15 = arith.constant 0.000000e+00 : f32
    %39 = vector.broadcast %cst_15 : f32 to vector<1x32xf32>
    %40 = arith.select %38, %29, %39 : vector<1x32xi1>, vector<1x32xf32>
    %41 = arith.addf %34, %40 : vector<1x32xf32>
    %c0_16 = arith.constant 0 : index
    %c0_17 = arith.constant 0 : index
    %42 = vector.load %arg6[%c0_16, %c0_17] : memref<1x32xf32, #tpu.memory_space<vmem>>, vector<1x32xf32>
    tpu.vector_store %arg6[%c0_16, %c0_17], %41 {strides = array<i32>} : memref<1x32xf32, #tpu.memory_space<vmem>>, vector<1x32xf32>,
    %c0_i32_18 = arith.constant 0 : i32
    %43 = arith.cmpi eq, %arg1, %c0_i32_18 : i32
    %44 = arith.extui %43 : i1 to i32
    %c0_i32_19 = arith.constant 0 : i32
    %45 = arith.cmpi ne, %44, %c0_i32_19 : i32
    scf.if %45 {
      %46 = tpu.iota {dimensions = array<i32: 0>} : vector<8x32xi32>
      %c0_i32_20 = arith.constant 0 : i32
      %47 = vector.broadcast %c0_i32_20 : i32 to vector<8x32xi32>
      %48 = arith.cmpi eq, %46, %47 : vector<8x32xi32>
      %c0_21 = arith.constant 0 : index
      %c0_22 = arith.constant 0 : index
      %49 = vector.load %arg6[%c0_21, %c0_22] : memref<1x32xf32, #tpu.memory_space<vmem>>, vector<1x32xf32>
      %cst_23 = arith.constant 0.000000e+00 : f32
      %50 = vector.shape_cast %49 : vector<1x32xf32> to vector<1x32xf32>
      %51 = vector.broadcast %50 : vector<1x32xf32> to vector<8x32xf32>
      %52 = vector.broadcast %cst_23 : f32 to vector<8x32xf32>
      %53 = arith.select %48, %51, %52 : vector<8x32xi1>, vector<8x32xf32>
      %c0_24 = arith.constant 0 : index
      %c0_25 = arith.constant 0 : index
      %54 = vector.load %arg5[%c0_24, %c0_25] : memref<8x32xf32, #tpu.memory_space<vmem>>, vector<8x32xf32>
      tpu.vector_store %arg5[%c0_24, %c0_25], %53 {strides = array<i32>} : memref<8x32xf32, #tpu.memory_space<vmem>>, vector<8x32xf32>,
    } else {
    }
    return
  }
  func.func @transform_0(%arg0: i32, %arg1: i32) -> (i32, i32) {
    %c1_i32 = arith.constant 1 : i32
    %0 = arith.muli %arg0, %c1_i32 : i32
    %1 = arith.addi %0, %arg1 : i32
    %c0_i32 = arith.constant 0 : i32
    %c0_i32_0 = arith.constant 0 : i32
    return %1, %c0_i32 : i32, i32
  }
  func.func @transform_1(%arg0: i32, %arg1: i32) -> (i32, i32) {
    %c0_i32 = arith.constant 0 : i32
    %c0_i32_0 = arith.constant 0 : i32
    %c0_i32_1 = arith.constant 0 : i32
    return %c0_i32, %c0_i32_0 : i32, i32
  }
  func.func @transform_2(%arg0: i32, %arg1: i32) -> (i32, i32) {
    %c0_i32 = arith.constant 0 : i32
    %c0_i32_0 = arith.constant 0 : i32
    %c0_i32_1 = arith.constant 0 : i32
    return %c0_i32, %c0_i32_0 : i32, i32
  }
  func.func @transform_3(%arg0: i32, %arg1: i32) -> (i32, i32) {
    %c0_i32 = arith.constant 0 : i32
    %c0_i32_0 = arith.constant 0 : i32
    return %arg0, %c0_i32 : i32, i32
  }
}

</mosaic_0001>

<llo_original>
// kernel: tpu_custom_call.1
$region0: #{tpu_custom_call.1}
  #allocation0 [shape = 'u32[]', space=smem, size = 0x4, offset = 0x4, fixed_abs, tag = 'smem constant byte address 0x4 - core index']
  #allocation1 [shape = 'u32[144,128]{1,0:T(1,128)}', space=vmem, size = 0x12000, scoped, tag = 'internal scratch']
  #allocation2 [shape = 'f32[1,32]{1,0:T(1,128)}', space=vmem, size = 0x200, scoped, tag = 'scratch operand']
  %s0 = inlined_call_operand.hbm [shape: bf16[64,128], index: 0, kind: input, shape index: {}]
  %s1 = inlined_call_operand.hbm [shape: bf16[128,128], index: 1, kind: input, shape index: {}]
  %s2 = inlined_call_operand.vmem [shape: bf16[1,128], index: 2, kind: input, shape index: {}]
  %s3 = inlined_call_operand.hbm [shape: f32[16,32], index: 3, kind: output, shape index: {}]
  %s4 = sld [smem:[#allocation0]]
  $region61: #{tpu_custom_call.1} parent=0
    _
  %s6 = ssub.s32 1, %s4
  %s7 = scalar_select 0, %s6, %s4
  $region1: #{tpu_custom_call.1} parent=0
    #allocation3 [shape = 'u8[16384]{0}', space=vmem, size = 0x4000, scoped, tag = 'input window, operand 0']
    #allocation4 [shape = 's32[2]{0}', space=sflag, size = 0x8, scoped, tag = 'scoped memory for tpu_custom_call.1']
    #allocation5 [shape = 's32[2]{0}', space=sflag, size = 0x8, scoped, tag = 'scoped memory for tpu_custom_call.1']
    #allocation6 [shape = 'u8[32768]{0}', space=vmem, size = 0x8000, scoped, tag = 'input window, operand 1, single buffered']
    #allocation7 [shape = 's32[1]{0}', space=sflag, size = 0x4, scoped, tag = 'scoped memory for tpu_custom_call.1']
    #allocation8 [shape = 'u8[8192]{0}', space=vmem, size = 0x2000, scoped, tag = 'output window, operand 0']
    %8 = vsyncpa [#allocation4], 0
    %s9 = scalar_lea.sflag [#allocation4], 1
    %10 = vsyncpa %s9, 0
    %11 = vsyncpa [#allocation7], 0
    %12 = vsyncpa [#allocation5], 0
    %s13 = scalar_lea.sflag [#allocation5], 1
    %14 = vsyncpa %s13, 0
    loop: start=0, step=1, limit=4
    $region2: #{tpu_custom_call.1} parent=1 // loop_pre_header
      _
    $region3: #{tpu_custom_call.1} parent=1 // loop_header
      %s16 = sphi 0, %s20
      %p17 = scmp.ge.s32.totalorder %s16, 4
      %s23 = sphi 0, %s35
      %s24 = sphi 0, %s31
      %s25 = sphi 0, %s23
      %s26 = sphi 0, %s24
      %s27 = sphi 0, %s25
      %s28 = sphi 0, %s26
      %s40 = sphi 0, %s42
      %s43 = sphi 0, %s40
      %s44 = sphi 0, %s43
      %s60 = sphi 0, %s44
      %s64 = sphi 0, %s64
      %s66 = sphi 0, %s64
      %s67 = sphi 0, %s66
      %s81 = sphi 0, %s67
      %s85 = sphi 0, %s85
      %s87 = sphi 0, %s85
      %s88 = sphi 0, %s87
      %s102 = sphi 0, %s88
      %s108 = sphi 0, %s110
      %s111 = sphi 0, %s108
      %s112 = sphi 0, %s111
      %s128 = sphi 0, %s112
    $region4: #{tpu_custom_call.1} parent=1 // loop_header_branch
      %19 = sbr.rel (%p17) target = $region8
    $region5: #{tpu_custom_call.1} parent=1 // loop_body
      %s21 = ssub.s32 %s16, 1
      %s22 = ssub.s32 %s16, 2
      %s29 = sadd.s32 1, %s24
      %p30 = scmp.ge.s32.totalorder %s29, 1
      %s31 = scalar_select %p30, 0, %s29
      %s32 = sadd.s32 1, %s23
      %s33 = scalar_select %p30, %s32, %s23
      %p34 = scmp.ge.s32.totalorder %s33, 2
      %s35 = scalar_select %p34, 0, %s33
      %s36 = sadd.s32 %s23, %s24
      %s37 = sadd.s32 %s35, %s31
      %s38 = ssub.s32 %s36, %s37
      %p39 = scmp.eq.s32.totalorder %s38, 0
      %s41 = sadd.s32 %s40, 1
      %s42 = scalar_select %p39, %s40, %s41
      %p45 = pneg %p39
      %p46 = scmp.eq.s32.totalorder %s16, 1
      %p47 = por %p45, %p46
      %p48 = scmp.ne.s32.totalorder %s40, %s43
      %p49 = scmp.eq.s32.totalorder %s16, 0
      %p50 = por %p48, %p49
      %p51 = scmp.ne.s32.totalorder %s40, %s43
      %p52 = scmp.eq.s32.totalorder %s21, 1
      %p53 = por %p51, %p52
      %p54 = scmp.ne.s32.totalorder %s43, %s44
      %p55 = scmp.eq.s32.totalorder %s21, 0
      %p56 = por %p54, %p55
      %p57 = scmp.ne.s32.totalorder %s43, %s44
      %p58 = scmp.eq.s32.totalorder %s22, 1
      %p59 = por %p57, %p58
      %p61 = scmp.ne.s32.totalorder %s44, %s60
      %p62 = scmp.eq.s32.totalorder %s22, 0
      %p63 = por %p61, %p62
      %s65 = sadd.s32 %s64, 1
      %p68 = scmp.eq.s32.totalorder %s16, 1
      %p69 = scmp.ne.s32.totalorder %s64, %s66
      %p70 = scmp.eq.s32.totalorder %s16, 0
      %p71 = por %p69, %p70
      %p72 = scmp.ne.s32.totalorder %s64, %s66
      %p73 = scmp.eq.s32.totalorder %s21, 1
      %p74 = por %p72, %p73
      %p75 = scmp.ne.s32.totalorder %s66, %s67
      %p76 = scmp.eq.s32.totalorder %s21, 0
      %p77 = por %p75, %p76
      %p78 = scmp.ne.s32.totalorder %s66, %s67
      %p79 = scmp.eq.s32.totalorder %s22, 1
      %p80 = por %p78, %p79
      %p82 = scmp.ne.s32.totalorder %s67, %s81
      %p83 = scmp.eq.s32.totalorder %s22, 0
      %p84 = por %p82, %p83
      %s86 = sadd.s32 %s85, 1
      %p89 = scmp.eq.s32.totalorder %s16, 1
      %p90 = scmp.ne.s32.totalorder %s85, %s87
      %p91 = scmp.eq.s32.totalorder %s16, 0
      %p92 = por %p90, %p91
      %p93 = scmp.ne.s32.totalorder %s85, %s87
      %p94 = scmp.eq.s32.totalorder %s21, 1
      %p95 = por %p93, %p94
      %p96 = scmp.ne.s32.totalorder %s87, %s88
      %p97 = scmp.eq.s32.totalorder %s21, 0
      %p98 = por %p96, %p97
      %p99 = scmp.ne.s32.totalorder %s87, %s88
      %p100 = scmp.eq.s32.totalorder %s22, 1
      %p101 = por %p99, %p100
      %p103 = scmp.ne.s32.totalorder %s88, %s102
      %p104 = scmp.eq.s32.totalorder %s22, 0
      %p105 = por %p103, %p104
      %s106 = ssub.s32 %s23, %s35
      %p107 = scmp.eq.s32.totalorder %s106, 0
      %s109 = sadd.s32 %s108, 1
      %s110 = scalar_select %p107, %s108, %s109
      %p113 = pneg %p107
      %p114 = scmp.eq.s32.totalorder %s16, 1
      %p115 = por %p113, %p114
      %p116 = scmp.ne.s32.totalorder %s108, %s111
      %p117 = scmp.eq.s32.totalorder %s16, 0
      %p118 = por %p116, %p117
      %p119 = scmp.ne.s32.totalorder %s108, %s111
      %p120 = scmp.eq.s32.totalorder %s21, 1
      %p121 = por %p119, %p120
      %p122 = scmp.ne.s32.totalorder %s111, %s112
      %p123 = scmp.eq.s32.totalorder %s21, 0
      %p124 = por %p122, %p123
      %p125 = scmp.ne.s32.totalorder %s111, %s112
      %p126 = scmp.eq.s32.totalorder %s22, 1
      %p127 = por %p125, %p126
      %p129 = scmp.ne.s32.totalorder %s112, %s128
      %p130 = scmp.eq.s32.totalorder %s22, 0
      %p131 = por %p129, %p130
      %p132 = scmp.le.s32.totalorder 1, %s16
      %p133 = scmp.lt.s32.totalorder %s16, 3
      %p134 = pnand %p132, %p133
      %p135 = pneg %p134
      // Predicated region
      $region9: #{tpu_custom_call.1} parent=5 // pred_check
        _
      $region10: #{tpu_custom_call.1} parent=5 // pred_check_branch
        %137 = sbr.rel (%p134) target = $region12
      $region11: #{tpu_custom_call.1} parent=5 // pred_region
        %s138 = ssub.s32 %s16, 1
        // Predicated region
        $region13: #{tpu_custom_call.1} parent=11 // pred_check
          %p139 = pneg %p77
        $region14: #{tpu_custom_call.1} parent=11 // pred_check_branch
          %141 = sbr.rel (%p139) target = $region16
        $region15: #{tpu_custom_call.1} parent=11 // pred_region
          %s143 = ssub.s32 1024, 1024
          %144 = vsyncadd [#allocation7], %s143
          %s145 = sshll.u32 [#allocation6], 4
          %s146 = int_to_ptr.vmem [resolvable:$true] %s145
          %151 = dma.hbm_to_vmem [thread:$0]  %s1, 1024, %s146, [#allocation7], 64, 64, 4
        $region16: #{tpu_custom_call.1} parent=11 // pred_fallthru
          _
        // Predicated region
        $region17: #{tpu_custom_call.1} parent=11 // pred_check
          %p152 = pneg %p98
        $region18: #{tpu_custom_call.1} parent=11 // pred_check_branch
          %154 = sbr.rel (%p152) target = $region20
        $region19: #{tpu_custom_call.1} parent=11 // pred_region
          _
        $region20: #{tpu_custom_call.1} parent=11 // pred_fallthru
          _
      $region12: #{tpu_custom_call.1} parent=5 // pred_fallthru
        _
      %p155 = scmp.lt.s32.totalorder %s16, 2
      // Predicated region
      $region21: #{tpu_custom_call.1} parent=5 // pred_check
        %p156 = pneg %p155
      $region22: #{tpu_custom_call.1} parent=5 // pred_check_branch
        %158 = sbr.rel (%p156) target = $region24
      $region23: #{tpu_custom_call.1} parent=5 // pred_region
        // Predicated region
        $region25: #{tpu_custom_call.1} parent=23 // pred_check
          %p159 = pneg %p50
        $region26: #{tpu_custom_call.1} parent=23 // pred_check_branch
          %161 = sbr.rel (%p159) target = $region28
        $region27: #{tpu_custom_call.1} parent=23 // pred_region
          %s162 = sand.u32 %s40, 1
          %s163 = scalar_lea.sflag [#allocation4], %s162
          %s164 = sand.u32 %s40, 1
          %s165 = smul.addr %s164, 16
          %s166 = scalar_lea.vmem [#allocation3], %s165
          %s167 = sadd.s32 %s23, %s24
          %s168 = smul.u32 4, %s167
          %s170 = ssub.s32 256, 256
          %171 = vsyncadd %s163, %s170
          %s172 = smul.addr %s168, 64
          %s173 = scalar_lea.hbm %s0, %s172
          %s174 = sshll.u32 %s166, 4
          %s175 = int_to_ptr.vmem [resolvable:$true] %s174
          %180 = dma.hbm_to_vmem [thread:$0]  %s173, 256, %s175, %s163, 64, 64, 4
        $region28: #{tpu_custom_call.1} parent=23 // pred_fallthru
          _
      $region24: #{tpu_custom_call.1} parent=5 // pred_fallthru
        _
      %p181 = scmp.le.s32.totalorder 1, %s16
      %p182 = scmp.lt.s32.totalorder %s16, 3
      %p183 = pnand %p181, %p182
      %p184 = pneg %p183
      // Predicated region
      $region29: #{tpu_custom_call.1} parent=5 // pred_check
        _
      $region30: #{tpu_custom_call.1} parent=5 // pred_check_branch
        %186 = sbr.rel (%p183) target = $region32
      $region31: #{tpu_custom_call.1} parent=5 // pred_region
        %s187 = ssub.s32 %s16, 1
        %s188 = sand.u32 %s43, 1
        %s189 = scalar_lea.sflag [#allocation4], %s188
        %s190 = sand.u32 %s43, 1
        %s191 = smul.addr %s190, 16
        %s192 = scalar_lea.vmem [#allocation3], %s191
        // Predicated region
        $region33: #{tpu_custom_call.1} parent=31 // pred_check
          %p193 = pneg %p56
        $region34: #{tpu_custom_call.1} parent=31 // pred_check_branch
          %195 = sbr.rel (%p193) target = $region36
        $region35: #{tpu_custom_call.1} parent=31 // pred_region
          %196 = dma.done %s189, 256
        $region36: #{tpu_custom_call.1} parent=31 // pred_fallthru
          _
        // Predicated region
        $region37: #{tpu_custom_call.1} parent=31 // pred_check
          %p197 = pneg %p77
        $region38: #{tpu_custom_call.1} parent=31 // pred_check_branch
          %199 = sbr.rel (%p197) target = $region40
        $region39: #{tpu_custom_call.1} parent=31 // pred_region
          %200 = dma.done [#allocation7], 1024
        $region40: #{tpu_custom_call.1} parent=31 // pred_fallthru
          _
        %s201 = sand.u32 %s43, 1
        %s202 = scalar_lea.sflag [#allocation4], %s201
        %s203 = sand.u32 %s43, 1
        %s204 = smul.addr %s203, 16
        %s205 = scalar_lea.vmem [#allocation3], %s204
        %p206 = pneg %p56
        %p207 = pneg %p53
        %p208 = pneg %p77
        %p209 = pneg %p74
        %p210 = pneg %p98
        %p211 = pneg %p95
        %p212 = pneg %p124
        %p213 = pneg %p121
        %s214 = sand.u32 %s111, 1
        %s215 = scalar_lea.sflag [#allocation5], %s214
        %s216 = sand.u32 %s111, 1
        %s217 = smul.addr %s216, 8
        %s218 = scalar_lea.vmem [#allocation8], %s217
        %s219 = sadd.s32 %s25, %s26
        %s220 = smul.u32 4, %s219
        %p222 = scmp.eq.s32.totalorder %s26, 0
        // Predicated region
        $region41: #{tpu_custom_call.1} parent=31 // pred_check
          %p223 = pneg %p222
        $region42: #{tpu_custom_call.1} parent=31 // pred_check_branch
          %225 = sbr.rel (%p223) target = $region44
        $region43: #{tpu_custom_call.1} parent=31 // pred_region
          %vm226 = vcmask 253952
          %227 = vst.msk [vmem:[#allocation2] sm:$0x1] %vm226, 0.0
        $region44: #{tpu_custom_call.1} parent=31 // pred_fallthru
          _
        %v228 = vld [vmem:[%s192] sm:$0xf]
        %v229 = vld [vmem:[%s192 + $0x4] sm:$0xf]
        %v230 = vld [vmem:[%s192 + $0x8] sm:$0xf]
        %v231 = vld [vmem:[%s192 + $0xc] sm:$0xf]
        %v232 = vld [vmem:[#allocation6] sm:$0xf]
        %v233 = vld [vmem:[#allocation6 + $0x4] sm:$0xf]
        %v234 = vld [vmem:[#allocation6 + $0x8] sm:$0xf]
        %v235 = vld [vmem:[#allocation6 + $0xc] sm:$0xf]
        %v236 = vld [vmem:[#allocation6 + $0x10] sm:$0xf]
        %v237 = vld [vmem:[#allocation6 + $0x14] sm:$0xf]
        %v238 = vld [vmem:[#allocation6 + $0x18] sm:$0xf]
        %v239 = vld [vmem:[#allocation6 + $0x1c] sm:$0xf]
        %v240 = vld [vmem:[#allocation6 + $0x20] sm:$0xf]
        %v241 = vld [vmem:[#allocation6 + $0x24] sm:$0xf]
        %v242 = vld [vmem:[#allocation6 + $0x28] sm:$0xf]
        %v243 = vld [vmem:[#allocation6 + $0x2c] sm:$0xf]
        %v244 = vld [vmem:[#allocation6 + $0x30] sm:$0xf]
        %v245 = vld [vmem:[#allocation6 + $0x34] sm:$0xf]
        %v246 = vld [vmem:[#allocation6 + $0x38] sm:$0xf]
        %v247 = vld [vmem:[#allocation6 + $0x3c] sm:$0xf]
        %v252 = vunpack.c.l.b16 %v228
        %v253 = vunpack.c.l.b16 %v229
        %v254 = vunpack.c.l.b16 %v230
        %v255 = vunpack.c.l.b16 %v231
        %v256 = vpack.c.b16 %v253, %v252
        %v257 = vpack.c.b16 %v255, %v254
        %v276 = vunpack.c.l.b16 %v232
        %v277 = vunpack.c.l.b16 %v233
        %v278 = vunpack.c.l.b16 %v234
        %v279 = vunpack.c.l.b16 %v235
        %v280 = vunpack.c.l.b16 %v236
        %v281 = vunpack.c.l.b16 %v237
        %v282 = vunpack.c.l.b16 %v238
        %v283 = vunpack.c.l.b16 %v239
        %v284 = vunpack.c.l.b16 %v240
        %v285 = vunpack.c.l.b16 %v241
        %v286 = vunpack.c.l.b16 %v242
        %v287 = vunpack.c.l.b16 %v243
        %v288 = vunpack.c.l.b16 %v244
        %v289 = vunpack.c.l.b16 %v245
        %v290 = vunpack.c.l.b16 %v246
        %v291 = vunpack.c.l.b16 %v247
        %v292 = vpack.c.b16 %v277, %v276
        %v293 = vpack.c.b16 %v279, %v278
        %v294 = vpack.c.b16 %v281, %v280
        %v295 = vpack.c.b16 %v283, %v282
        %v296 = vpack.c.b16 %v285, %v284
        %v297 = vpack.c.b16 %v287, %v286
        %v298 = vpack.c.b16 %v289, %v288
        %v299 = vpack.c.b16 %v291, %v290
        %308 = vmatprep.subr.bf16.mxu0 0
        %309 = vmatpush1.bf16.xpose.msra.mxu0 %v292
        %310 = vmatprep.subr.bf16.mxu0 0
        %311 = vmatpush1.bf16.xpose.msra.mxu0 %v293
        %312 = vmatprep.subr.bf16.mxu0 0
        %313 = vmatpush1.bf16.xpose.msra.mxu0 %v294
        %314 = vmatprep.subr.bf16.mxu0 0
        %315 = vmatpush1.bf16.xpose.msra.mxu0 %v295
        %316 = vmatprep.subr.bf16.mxu0 0
        %317 = vmatpush1.bf16.xpose.msra.mxu0 %v296
        %318 = vmatprep.subr.bf16.mxu0 0
        %319 = vmatpush1.bf16.xpose.msra.mxu0 %v297
        %320 = vmatprep.subr.bf16.mxu0 0
        %321 = vmatpush1.bf16.xpose.msra.mxu0 %v298
        %322 = vmatprep.subr.bf16.mxu0 0
        %323 = vmatpush1.bf16.xpose.msra.mxu0 %v299
        %324 = vmatprep.subr.bf16.mxu0 0
        %325 = vmatpush1.bf16.xpose.msra.mxu0 0
        %326 = vmatprep.subr.bf16.mxu0 0
        %327 = vmatpush1.bf16.xpose.msra.mxu0 0
        %328 = vmatprep.subr.bf16.mxu0 0
        %329 = vmatpush1.bf16.xpose.msra.mxu0 0
        %330 = vmatprep.subr.bf16.mxu0 0
        %331 = vmatpush1.bf16.xpose.msra.mxu0 0
        %332 = vmatprep.subr.bf16.mxu0 0
        %333 = vmatpush1.bf16.xpose.msra.mxu0 0
        %334 = vmatprep.subr.bf16.mxu0 0
        %335 = vmatpush1.bf16.xpose.msra.mxu0 0
        %336 = vmatprep.subr.bf16.mxu0 0
        %337 = vmatpush1.bf16.xpose.msra.mxu0 0
        %338 = vmatprep.subr.bf16.mxu0 0
        %339 = vmatpush1.bf16.xpose.msra.mxu0 0
        %340 = vmatprep.mubr.bf16.mxu0 0
        %341 = vmatmul.mubr.bf16.gmra.mrb[0].mxu0 %v256
        %v342 = vpop.f32.mrb[0].mxu0
        %v343 = vadd.f32 0.0, %v342
        %v344 = vpop.f32.mrb[0].mxu0
        %v345 = vpop.f32.mrb[0].mxu0
        %v346 = vadd.f32 0.0, %v345
        %v347 = vpop.f32.mrb[0].mxu0
        %348 = vmatprep.mubr.bf16.mxu0 0
        %349 = vmatmul.mubr.bf16.gmra.mrb[0].mxu0 %v257
        %v350 = vpop.f32.mrb[0].mxu0
        %v351 = vadd.f32 0.0, %v350
        %v352 = vpop.f32.mrb[0].mxu0
        %v353 = vpop.f32.mrb[0].mxu0
        %v354 = vadd.f32 0.0, %v353
        %v355 = vpop.f32.mrb[0].mxu0
        %356 = vdwg.mxu0
        %v357 = vmax.f32 %v343, 0.0
        %v358 = vmax.f32 %v346, 0.0
        %v359 = vmax.f32 %v351, 0.0
        %v360 = vmax.f32 %v354, 0.0
        %v361 = vld [vmem:[%s2] sm:$0x1]
        %v362 = vpack.c.bf16 %v358, %v357
        %v363 = vpack.c.bf16 %v360, %v359
        %364 = vmatprep.subr.bf16.mxu0 0
        %365 = vmatpush1.bf16.xpose.msra.mxu0 %v362
        %366 = vmatprep.subr.bf16.mxu0 0
        %367 = vmatpush1.bf16.xpose.msra.mxu0 %v363
        %368 = vmatprep.subr.bf16.mxu0 0
        %369 = vmatpush1.bf16.xpose.msra.mxu0 0
        %370 = vmatprep.subr.bf16.mxu0 0
        %371 = vmatpush1.bf16.xpose.msra.mxu0 0
        %372 = vmatprep.subr.bf16.mxu0 0
        %373 = vmatpush1.bf16.xpose.msra.mxu0 0
        %374 = vmatprep.subr.bf16.mxu0 0
        %375 = vmatpush1.bf16.xpose.msra.mxu0 0
        %376 = vmatprep.subr.bf16.mxu0 0
        %377 = vmatpush1.bf16.xpose.msra.mxu0 0
        %378 = vmatprep.subr.bf16.mxu0 0
        %379 = vmatpush1.bf16.xpose.msra.mxu0 0
        %380 = vmatprep.subr.bf16.mxu0 0
        %381 = vmatpush1.bf16.xpose.msra.mxu0 0
        %382 = vmatprep.subr.bf16.mxu0 0
        %383 = vmatpush1.bf16.xpose.msra.mxu0 0
        %384 = vmatprep.subr.bf16.mxu0 0
        %385 = vmatpush1.bf16.xpose.msra.mxu0 0
        %386 = vmatprep.subr.bf16.mxu0 0
        %387 = vmatpush1.bf16.xpose.msra.mxu0 0
        %388 = vmatprep.subr.bf16.mxu0 0
        %389 = vmatpush1.bf16.xpose.msra.mxu0 0
        %390 = vmatprep.subr.bf16.mxu0 0
        %391 = vmatpush1.bf16.xpose.msra.mxu0 0
        %392 = vmatprep.subr.bf16.mxu0 0
        %393 = vmatpush1.bf16.xpose.msra.mxu0 0
        %394 = vmatprep.subr.bf16.mxu0 0
        %395 = vmatpush1.bf16.xpose.msra.mxu0 0
        %396 = vmatprep.mubr.bf16.mxu0 0
        %397 = vmatmul.mubr.bf16.gmra.mrb[0].mxu0 %v361
        %v398 = vpop.f32.mrb[0].mxu0
        %v399 = vadd.f32 0.0, %v398
        %v400 = vpop.f32.mrb[0].mxu0
        %v401 = vpop.f32.mrb[0].mxu0
        %v402 = vpop.f32.mrb[0].mxu0
        %403 = vdwg.mxu0
        %v404 = vand.u32 2147483647, %v399
        %v405 = vsub.f32 0.0, %v404
        %v406 = vmul.f32 %v405, 1.442695
        %v407 = vpow.pop %v406
        %v408 = vmax.f32 %v399, 0.0
        %v409 = vadd.f32 %v407, 1.0
        %v410 = vlog2.pop %v409
        %v411 = vmul.f32 %v410, 0.6931472
        %v412 = vmul.f32 -0.5, %v407
        %v413 = vadd.f32 %v412, 1.0
        %v414 = vmul.f32 %v413, %v407
        %v415 = vand.u32 2147483647, %v407
        %vm416 = vcmp.lt.f32.partialorder %v415, 0.0004427343
        %v417 = vsel %vm416, %v414, %v411
        %v418 = vadd.f32 %v408, %v417
        %v419 = vadd.f32 %v407, 1.0
        %v420 = vrcp.pop %v419
        %vm421 = vcmp.ge.f32.partialorder %v399, 0.0
        %v422 = vmul.f32 %v407, %v420
        %v423 = vsel %vm421, %v420, %v422
        %v424 = vmul.f32 %v418, 0.75
        %v425 = vmul.f32 %v423, %v423
        %v426 = vmul.f32 %v424, %v425
        %v427 = vlaneseq
        %v428 = vand.u32 %v427, 127
        %s429 = sadd.s32 %s25, %s26
        %s430 = smul.u32 %s429, 32
        %v431 = vld [vmem:[#allocation2] sm:$0x1]
        %v432 = vstv %s430
        %v433 = vadd.s32 %v432, %v428
        %vm434 = vcmp.lt.s32.totalorder %v433, 37
        %v435 = vsel %vm434, %v426, 0.0
        %v436 = vadd.f32 %v431, %v435
        %vm437 = vcmask 253952
        %438 = vst.msk [vmem:[#allocation2] sm:$0x1] %vm437, %v436
        // Predicated region
        $region45: #{tpu_custom_call.1} parent=31 // pred_check
          %p439 = pneg %p222
        $region46: #{tpu_custom_call.1} parent=31 // pred_check_branch
          %441 = sbr.rel (%p439) target = $region48
        $region47: #{tpu_custom_call.1} parent=31 // pred_region
          %v442 = vlaneseq
          %v443 = vshrl.u32 %v442, 7
          %vm444 = vcmp.eq.s32.totalorder %v443, 0
          %v445 = vld [vmem:[#allocation2] sm:$0x1]
          %v447 = vlaneseq
          %v448 = vshrl.u32 %v447, 7
          %v449 = vsub.s32 0, %v448
          %v450 = vrot.slane %v445, %v449
          %v452 = vsel %vm444, %v450, 0.0
          %vm453 = vcmask 261120
          %454 = vst.msk [vmem:[%s218] sm:$0xff] %vm453, %v452
        $region48: #{tpu_custom_call.1} parent=31 // pred_fallthru
          _
        %s455 = sand.u32 %s111, 1
        %s456 = scalar_lea.sflag [#allocation5], %s455
        %s457 = sand.u32 %s111, 1
        %s458 = smul.addr %s457, 8
        %s459 = scalar_lea.vmem [#allocation8], %s458
        // Predicated region
        $region49: #{tpu_custom_call.1} parent=31 // pred_check
          %p460 = pneg %p121
        $region50: #{tpu_custom_call.1} parent=31 // pred_check_branch
          %462 = sbr.rel (%p460) target = $region52
        $region51: #{tpu_custom_call.1} parent=31 // pred_region
          %s464 = ssub.s32 128, 128
          %465 = vsyncadd %s456, %s464
          %s466 = smul.addr %s25, 128
          %s467 = scalar_lea.hbm %s3, %s466
          %s469 = sshll.u32 %s459, 4
          %s470 = int_to_ptr.vmem [resolvable:$true] %s469
          %472 = dma.vmem_to_hbm [thread:$0]  %s470, 128, %s467, %s456
        $region52: #{tpu_custom_call.1} parent=31 // pred_fallthru
          _
      $region32: #{tpu_custom_call.1} parent=5 // pred_fallthru
        _
      %p473 = scmp.le.s32.totalorder 2, %s16
      // Predicated region
      $region53: #{tpu_custom_call.1} parent=5 // pred_check
        %p474 = pneg %p473
      $region54: #{tpu_custom_call.1} parent=5 // pred_check_branch
        %476 = sbr.rel (%p474) target = $region56
      $region55: #{tpu_custom_call.1} parent=5 // pred_region
        %s477 = ssub.s32 %s16, 2
        // Predicated region
        $region57: #{tpu_custom_call.1} parent=55 // pred_check
          %p478 = pneg %p127
        $region58: #{tpu_custom_call.1} parent=55 // pred_check_branch
          %480 = sbr.rel (%p478) target = $region60
        $region59: #{tpu_custom_call.1} parent=55 // pred_region
          %s481 = sand.u32 %s112, 1
          %s482 = scalar_lea.sflag [#allocation5], %s481
          %s483 = sand.u32 %s112, 1
          %s484 = smul.addr %s483, 8
          %s485 = scalar_lea.vmem [#allocation8], %s484
          %486 = dma.done %s482, 128
        $region60: #{tpu_custom_call.1} parent=55 // pred_fallthru
          _
      $region56: #{tpu_custom_call.1} parent=5 // pred_fallthru
        _
    $region6: #{tpu_custom_call.1} parent=1 // loop_footer
      %s20 = sadd.s32 1, %s16
    $region7: #{tpu_custom_call.1} parent=1 // loop_footer_branch
      %15 = sbr.rel target = $region3
    $region8: #{tpu_custom_call.1} parent=1 // loop_exit
      _
    %487 = vsyncpa [#allocation4], 1
    %s488 = scalar_lea.sflag [#allocation4], 1
    %489 = vsyncpa %s488, 1
    %490 = vsyncpa [#allocation7], 1
    %491 = vsyncpa [#allocation5], 1
    %s492 = scalar_lea.sflag [#allocation5], 1
    %493 = vsyncpa %s492, 1

</llo_original>
